<compile_context>
chip_gen: v7x
topology: tpu7x:2x2x1
jax: 0.10.0
libtpu: 0.0.40
codegen_flags: <defaults>
</compile_context>

<pallas_src>
import itertools

import jax
import jax.numpy as jnp
from jax.experimental import pallas as pl
from jax.experimental.pallas import tpu as pltpu


def _cdiv(a, b):
    return (a + b - 1) // b


def _round_up(a, b):
    return _cdiv(a, b) * b


def _pick_batch_tile(n_cases, block_b, min_steps=2):
    """Batch tile: multiple of 8 sublanes, ~<= block_b, and split into >= min_steps
    grid steps when the batch is large enough (so dimension_semantics="parallel"
    can shard across TensorCores on v7x) without doubling padded work on awkward
    batch sizes (e.g. 520 with block_b=512 -> tile 264, not pad to 1024)."""
    steps = max(_cdiv(n_cases, max(block_b, 8)), 1)
    if steps < min_steps and n_cases >= 8 * min_steps:
        steps = min_steps
    return _round_up(_cdiv(n_cases, steps), 8)


def _antecedent_kernel(x_ref, idx_ref, out_ref):
    # x_ref:   (TB, n_in * n_mfs)   batch on sublanes, flattened (var, mf) on lanes
    # idx_ref: (n_in, RC) int32     MF index per (variable, rule) for this rule chunk
    # out_ref: (TB, RC)             fire strengths for this (batch, rule) tile
    n_in = idx_ref.shape[0]
    n_mfs = x_ref.shape[1] // n_in

    x = x_ref[...].astype(jnp.float32)          # single hoisted load of the batch tile

    acc = None
    for v in range(n_in):                        # n_in is small & static -> unrolled
        idx_v = idx_ref[pl.ds(v, 1), :]          # (1, RC)
        base = v * n_mfs
        # Exact gather x[:, v, idx_v] as a select chain over the n_mfs columns
        # (VPU only: no MXU passes, no zero-padded K, bit-exact like torch.gather).
        ants_v = jnp.where(idx_v == 0, x[:, base:base + 1], 0.0)          # (TB, RC)
        for m in range(1, n_mfs):
            ants_v = jnp.where(idx_v == m, x[:, base + m:base + m + 1], ants_v)
        acc = ants_v if acc is None else acc * ants_v
    out_ref[...] = acc.astype(out_ref.dtype)


def make_mf_indices(mf_count):
    """itertools.product over per-variable MF counts -> (n_rules, n_in) int32."""
    idx = list(itertools.product(*[range(n) for n in mf_count]))
    return jnp.asarray(idx, dtype=jnp.int32)


def antecedent_layer_forward(x, mf_indices, *, block_b=1024, block_r=512,
                             out_dtype=None):
    """x: (n_cases, n_in, n_mfs) -> fire strengths (n_cases, n_rules).

    mf_indices: (n_rules, n_in) int — callers that invoke this repeatedly should
    precompute `jnp.asarray(mf_indices, jnp.int32).T` once at layer init and reuse
    it (it depends only on the rule table); here the conversion is a few KB.
    """
    n_cases, n_in, n_mfs = x.shape
    n_rules = mf_indices.shape[0]
    feat = n_in * n_mfs
    out_dtype = x.dtype if out_dtype is None else out_dtype
    # TODO(synk): per-variable MF counts (ragged x) would need padded x / offsets;
    # the PyTorch module's gather also assumes a rectangular (n_in, n_mfs) x.

    # Batch on sublanes, flattened features on lanes (free reshape, no HBM copy).
    x_flat = jnp.reshape(x, (n_cases, feat))
    # Rules on lanes: tiny (n_in, n_rules) int32 index table.
    idx_t = jnp.asarray(mf_indices, dtype=jnp.int32).T

    # Lane-dense rule chunk (multiple of 128, capped to bound VMEM on v7x) and a
    # batch tile giving >=2 grid steps when possible. Remainders in both axes are
    # covered by masked partial blocks — no padding / slicing in the wrapper.
    rc = min(_round_up(n_rules, 128), _round_up(block_r, 128))
    tb = _pick_batch_tile(n_cases, block_b)
    grid = (_cdiv(n_cases, tb), _cdiv(n_rules, rc))

    itemsize_in = jnp.dtype(x.dtype).itemsize
    itemsize_out = jnp.dtype(out_dtype).itemsize
    cost = pl.CostEstimate(
        flops=n_cases * n_rules * n_in,
        transcendentals=0,
        bytes_accessed=(n_cases * feat * itemsize_in
                        + n_cases * n_rules * itemsize_out
                        + n_in * n_rules * 4),
    )

    out = pl.pallas_call(
        _antecedent_kernel,
        out_shape=jax.ShapeDtypeStruct((n_cases, n_rules), out_dtype),
        grid=grid,
        in_specs=[
            # x tile is constant along the rules axis -> not re-DMA'd per rule chunk.
            pl.BlockSpec((tb, feat), lambda i, j: (i, 0)),
            pl.BlockSpec((n_in, rc), lambda i, j: (0, j)),
        ],
        out_specs=pl.BlockSpec((tb, rc), lambda i, j: (i, j)),
        compiler_params=pltpu.CompilerParams(
            dimension_semantics=("parallel", "parallel"),
        ),
        cost_estimate=cost,
    )(x_flat, idx_t)
    return out


def reference_forward(x, mf_indices):
    """Pure-JAX reference matching the PyTorch gather/prod semantics."""
    # ants[b, r, v] = x[b, v, mf_indices[r, v]]
    ants = x[:, jnp.arange(x.shape[1])[None, :], mf_indices]  # (B, n_rules, n_in)
    return jnp.prod(ants, axis=2)


if __name__ == "__main__":
    key = jax.random.PRNGKey(0)
    k1, k2 = jax.random.split(key)

    # --- Test 1: 4 vars, 3 MFs each -> 81 rules (single block, partial rule lanes) ---
    n_cases, n_in, n_mfs = 8, 4, 3
    mf_indices = make_mf_indices([n_mfs] * n_in)              # (81, 4)
    x = jax.random.uniform(k1, (n_cases, n_in, n_mfs), dtype=jnp.float32)

    y = jax.block_until_ready(antecedent_layer_forward(x, mf_indices))
    y_ref = reference_forward(x, mf_indices)
    assert y.shape == (n_cases, mf_indices.shape[0])
    assert jnp.allclose(y, y_ref, rtol=1e-5, atol=1e-6)

    # --- Test 2: multi-step batch grid + partial batch/rule blocks (5 vars -> 243 rules) ---
    n_cases2, n_in2, n_mfs2 = 300, 5, 3
    mf_indices2 = make_mf_indices([n_mfs2] * n_in2)           # (243, 5)
    x2 = jax.random.uniform(k2, (n_cases2, n_in2, n_mfs2), dtype=jnp.float32)

    y2 = jax.block_until_ready(
        antecedent_layer_forward(x2, mf_indices2, block_b=128)
    )
    y2_ref = reference_forward(x2, mf_indices2)
    assert y2.shape == (n_cases2, mf_indices2.shape[0])
    assert jnp.allclose(y2, y2_ref, rtol=1e-5, atol=1e-6)

    print("KERNEL_OK")
</pallas_src>

<mosaic_0001>
module attributes {stable_mosaic.version = 11 : i64} {
  func.func @_antecedent_kernel(%arg0: i32, %arg1: i32, %arg2: memref<8x12xf32, #tpu.memory_space<vmem>>, %arg3: memref<4x128xi32, #tpu.memory_space<vmem>>, %arg4: memref<8x128xf32, #tpu.memory_space<vmem>>) attributes {dimension_semantics = [#tpu.dimension_semantics<parallel>, #tpu.dimension_semantics<parallel>], iteration_bounds = array<i64: 1, 1>, scalar_prefetch = 0 : i64, scratch_operands = 0 : i64, tpu.core_type = #tpu.core_type<tc>, window_params = [{transform_indices = @transform_0, window_bounds = array<i64: 8, 12>}, {transform_indices = @transform_1, window_bounds = array<i64: 4, 128>}, {transform_indices = @transform_2, window_bounds = array<i64: 8, 128>}]} {
    %c0 = arith.constant 0 : index
    %c0_0 = arith.constant 0 : index
    %0 = vector.load %arg2[%c0, %c0_0] : memref<8x12xf32, #tpu.memory_space<vmem>>, vector<8x12xf32>
    %c0_1 = arith.constant 0 : index
    %c0_2 = arith.constant 0 : index
    %1 = vector.load %arg3[%c0_1, %c0_2] : memref<4x128xi32, #tpu.memory_space<vmem>>, vector<1x128xi32>
    %c0_i32 = arith.constant 0 : i32
    %2 = vector.broadcast %c0_i32 : i32 to vector<1x128xi32>
    %3 = arith.cmpi eq, %1, %2 : vector<1x128xi32>
    %4 = vector.extract_strided_slice %0 {offsets = [0, 0], sizes = [8, 1], strides = [1, 1]} : vector<8x12xf32> to vector<8x1xf32>
    %cst = arith.constant 0.000000e+00 : f32
    %5 = vector.shape_cast %3 : vector<1x128xi1> to vector<1x128xi1>
    %6 = vector.broadcast %5 : vector<1x128xi1> to vector<8x128xi1>
    %7 = vector.shape_cast %4 : vector<8x1xf32> to vector<8x1xf32>
    %8 = vector.broadcast %7 : vector<8x1xf32> to vector<8x128xf32>
    %9 = vector.broadcast %cst : f32 to vector<8x128xf32>
    %10 = arith.select %6, %8, %9 : vector<8x128xi1>, vector<8x128xf32>
    %c1_i32 = arith.constant 1 : i32
    %11 = vector.broadcast %c1_i32 : i32 to vector<1x128xi32>
    %12 = arith.cmpi eq, %1, %11 : vector<1x128xi32>
    %13 = vector.extract_strided_slice %0 {offsets = [0, 1], sizes = [8, 1], strides = [1, 1]} : vector<8x12xf32> to vector<8x1xf32>
    %14 = vector.shape_cast %12 : vector<1x128xi1> to vector<1x128xi1>
    %15 = vector.broadcast %14 : vector<1x128xi1> to vector<8x128xi1>
    %16 = vector.shape_cast %13 : vector<8x1xf32> to vector<8x1xf32>
    %17 = vector.broadcast %16 : vector<8x1xf32> to vector<8x128xf32>
    %18 = arith.select %15, %17, %10 : vector<8x128xi1>, vector<8x128xf32>
    %c2_i32 = arith.constant 2 : i32
    %19 = vector.broadcast %c2_i32 : i32 to vector<1x128xi32>
    %20 = arith.cmpi eq, %1, %19 : vector<1x128xi32>
    %21 = vector.extract_strided_slice %0 {offsets = [0, 2], sizes = [8, 1], strides = [1, 1]} : vector<8x12xf32> to vector<8x1xf32>
    %22 = vector.shape_cast %20 : vector<1x128xi1> to vector<1x128xi1>
    %23 = vector.broadcast %22 : vector<1x128xi1> to vector<8x128xi1>
    %24 = vector.shape_cast %21 : vector<8x1xf32> to vector<8x1xf32>
    %25 = vector.broadcast %24 : vector<8x1xf32> to vector<8x128xf32>
    %26 = arith.select %23, %25, %18 : vector<8x128xi1>, vector<8x128xf32>
    %c1 = arith.constant 1 : index
    %c0_3 = arith.constant 0 : index
    %27 = vector.load %arg3[%c1, %c0_3] : memref<4x128xi32, #tpu.memory_space<vmem>>, vector<1x128xi32>
    %c0_i32_4 = arith.constant 0 : i32
    %28 = vector.broadcast %c0_i32_4 : i32 to vector<1x128xi32>
    %29 = arith.cmpi eq, %27, %28 : vector<1x128xi32>
    %30 = vector.extract_strided_slice %0 {offsets = [0, 3], sizes = [8, 1], strides = [1, 1]} : vector<8x12xf32> to vector<8x1xf32>
    %cst_5 = arith.constant 0.000000e+00 : f32
    %31 = vector.shape_cast %29 : vector<1x128xi1> to vector<1x128xi1>
    %32 = vector.broadcast %31 : vector<1x128xi1> to vector<8x128xi1>
    %33 = vector.shape_cast %30 : vector<8x1xf32> to vector<8x1xf32>
    %34 = vector.broadcast %33 : vector<8x1xf32> to vector<8x128xf32>
    %35 = vector.broadcast %cst_5 : f32 to vector<8x128xf32>
    %36 = arith.select %32, %34, %35 : vector<8x128xi1>, vector<8x128xf32>
    %c1_i32_6 = arith.constant 1 : i32
    %37 = vector.broadcast %c1_i32_6 : i32 to vector<1x128xi32>
    %38 = arith.cmpi eq, %27, %37 : vector<1x128xi32>
    %39 = vector.extract_strided_slice %0 {offsets = [0, 4], sizes = [8, 1], strides = [1, 1]} : vector<8x12xf32> to vector<8x1xf32>
    %40 = vector.shape_cast %38 : vector<1x128xi1> to vector<1x128xi1>
    %41 = vector.broadcast %40 : vector<1x128xi1> to vector<8x128xi1>
    %42 = vector.shape_cast %39 : vector<8x1xf32> to vector<8x1xf32>
    %43 = vector.broadcast %42 : vector<8x1xf32> to vector<8x128xf32>
    %44 = arith.select %41, %43, %36 : vector<8x128xi1>, vector<8x128xf32>
    %c2_i32_7 = arith.constant 2 : i32
    %45 = vector.broadcast %c2_i32_7 : i32 to vector<1x128xi32>
    %46 = arith.cmpi eq, %27, %45 : vector<1x128xi32>
    %47 = vector.extract_strided_slice %0 {offsets = [0, 5], sizes = [8, 1], strides = [1, 1]} : vector<8x12xf32> to vector<8x1xf32>
    %48 = vector.shape_cast %46 : vector<1x128xi1> to vector<1x128xi1>
    %49 = vector.broadcast %48 : vector<1x128xi1> to vector<8x128xi1>
    %50 = vector.shape_cast %47 : vector<8x1xf32> to vector<8x1xf32>
    %51 = vector.broadcast %50 : vector<8x1xf32> to vector<8x128xf32>
    %52 = arith.select %49, %51, %44 : vector<8x128xi1>, vector<8x128xf32>
    %53 = arith.mulf %26, %52 : vector<8x128xf32>
    %c2 = arith.constant 2 : index
    %c0_8 = arith.constant 0 : index
    %54 = vector.load %arg3[%c2, %c0_8] : memref<4x128xi32, #tpu.memory_space<vmem>>, vector<1x128xi32>
    %c0_i32_9 = arith.constant 0 : i32
    %55 = vector.broadcast %c0_i32_9 : i32 to vector<1x128xi32>
    %56 = arith.cmpi eq, %54, %55 : vector<1x128xi32>
    %57 = vector.extract_strided_slice %0 {offsets = [0, 6], sizes = [8, 1], strides = [1, 1]} : vector<8x12xf32> to vector<8x1xf32>
    %cst_10 = arith.constant 0.000000e+00 : f32
    %58 = vector.shape_cast %56 : vector<1x128xi1> to vector<1x128xi1>
    %59 = vector.broadcast %58 : vector<1x128xi1> to vector<8x128xi1>
    %60 = vector.shape_cast %57 : vector<8x1xf32> to vector<8x1xf32>
    %61 = vector.broadcast %60 : vector<8x1xf32> to vector<8x128xf32>
    %62 = vector.broadcast %cst_10 : f32 to vector<8x128xf32>
    %63 = arith.select %59, %61, %62 : vector<8x128xi1>, vector<8x128xf32>
    %c1_i32_11 = arith.constant 1 : i32
    %64 = vector.broadcast %c1_i32_11 : i32 to vector<1x128xi32>
    %65 = arith.cmpi eq, %54, %64 : vector<1x128xi32>
    %66 = vector.extract_strided_slice %0 {offsets = [0, 7], sizes = [8, 1], strides = [1, 1]} : vector<8x12xf32> to vector<8x1xf32>
    %67 = vector.shape_cast %65 : vector<1x128xi1> to vector<1x128xi1>
    %68 = vector.broadcast %67 : vector<1x128xi1> to vector<8x128xi1>
    %69 = vector.shape_cast %66 : vector<8x1xf32> to vector<8x1xf32>
    %70 = vector.broadcast %69 : vector<8x1xf32> to vector<8x128xf32>
    %71 = arith.select %68, %70, %63 : vector<8x128xi1>, vector<8x128xf32>
    %c2_i32_12 = arith.constant 2 : i32
    %72 = vector.broadcast %c2_i32_12 : i32 to vector<1x128xi32>
    %73 = arith.cmpi eq, %54, %72 : vector<1x128xi32>
    %74 = vector.extract_strided_slice %0 {offsets = [0, 8], sizes = [8, 1], strides = [1, 1]} : vector<8x12xf32> to vector<8x1xf32>
    %75 = vector.shape_cast %73 : vector<1x128xi1> to vector<1x128xi1>
    %76 = vector.broadcast %75 : vector<1x128xi1> to vector<8x128xi1>
    %77 = vector.shape_cast %74 : vector<8x1xf32> to vector<8x1xf32>
    %78 = vector.broadcast %77 : vector<8x1xf32> to vector<8x128xf32>
    %79 = arith.select %76, %78, %71 : vector<8x128xi1>, vector<8x128xf32>
    %80 = arith.mulf %53, %79 : vector<8x128xf32>
    %c3 = arith.constant 3 : index
    %c0_13 = arith.constant 0 : index
    %81 = vector.load %arg3[%c3, %c0_13] : memref<4x128xi32, #tpu.memory_space<vmem>>, vector<1x128xi32>
    %c0_i32_14 = arith.constant 0 : i32
    %82 = vector.broadcast %c0_i32_14 : i32 to vector<1x128xi32>
    %83 = arith.cmpi eq, %81, %82 : vector<1x128xi32>
    %84 = vector.extract_strided_slice %0 {offsets = [0, 9], sizes = [8, 1], strides = [1, 1]} : vector<8x12xf32> to vector<8x1xf32>
    %cst_15 = arith.constant 0.000000e+00 : f32
    %85 = vector.shape_cast %83 : vector<1x128xi1> to vector<1x128xi1>
    %86 = vector.broadcast %85 : vector<1x128xi1> to vector<8x128xi1>
    %87 = vector.shape_cast %84 : vector<8x1xf32> to vector<8x1xf32>
    %88 = vector.broadcast %87 : vector<8x1xf32> to vector<8x128xf32>
    %89 = vector.broadcast %cst_15 : f32 to vector<8x128xf32>
    %90 = arith.select %86, %88, %89 : vector<8x128xi1>, vector<8x128xf32>
    %c1_i32_16 = arith.constant 1 : i32
    %91 = vector.broadcast %c1_i32_16 : i32 to vector<1x128xi32>
    %92 = arith.cmpi eq, %81, %91 : vector<1x128xi32>
    %93 = vector.extract_strided_slice %0 {offsets = [0, 10], sizes = [8, 1], strides = [1, 1]} : vector<8x12xf32> to vector<8x1xf32>
    %94 = vector.shape_cast %92 : vector<1x128xi1> to vector<1x128xi1>
    %95 = vector.broadcast %94 : vector<1x128xi1> to vector<8x128xi1>
    %96 = vector.shape_cast %93 : vector<8x1xf32> to vector<8x1xf32>
    %97 = vector.broadcast %96 : vector<8x1xf32> to vector<8x128xf32>
    %98 = arith.select %95, %97, %90 : vector<8x128xi1>, vector<8x128xf32>
    %c2_i32_17 = arith.constant 2 : i32
    %99 = vector.broadcast %c2_i32_17 : i32 to vector<1x128xi32>
    %100 = arith.cmpi eq, %81, %99 : vector<1x128xi32>
    %101 = vector.extract_strided_slice %0 {offsets = [0, 11], sizes = [8, 1], strides = [1, 1]} : vector<8x12xf32> to vector<8x1xf32>
    %102 = vector.shape_cast %100 : vector<1x128xi1> to vector<1x128xi1>
    %103 = vector.broadcast %102 : vector<1x128xi1> to vector<8x128xi1>
    %104 = vector.shape_cast %101 : vector<8x1xf32> to vector<8x1xf32>
    %105 = vector.broadcast %104 : vector<8x1xf32> to vector<8x128xf32>
    %106 = arith.select %103, %105, %98 : vector<8x128xi1>, vector<8x128xf32>
    %107 = arith.mulf %80, %106 : vector<8x128xf32>
    %c0_18 = arith.constant 0 : index
    %c0_19 = arith.constant 0 : index
    %108 = vector.load %arg4[%c0_18, %c0_19] : memref<8x128xf32, #tpu.memory_space<vmem>>, vector<8x128xf32>
    tpu.vector_store %arg4[%c0_18, %c0_19], %107 {strides = array<i32>} : memref<8x128xf32, #tpu.memory_space<vmem>>, vector<8x128xf32>,
    return
  }
  func.func @transform_0(%arg0: i32, %arg1: i32) -> (i32, i32) {
    %c0_i32 = arith.constant 0 : i32
    %c0_i32_0 = arith.constant 0 : i32
    return %arg0, %c0_i32 : i32, i32
  }
  func.func @transform_1(%arg0: i32, %arg1: i32) -> (i32, i32) {
    %c0_i32 = arith.constant 0 : i32
    %c0_i32_0 = arith.constant 0 : i32
    return %c0_i32, %arg1 : i32, i32
  }
  func.func @transform_2(%arg0: i32, %arg1: i32) -> (i32, i32) {
    %c0_i32 = arith.constant 0 : i32
    return %arg0, %arg1 : i32, i32
  }
}

</mosaic_0001>

<llo_original>
// kernel: tpu_custom_call.1
$region0: #{tpu_custom_call.1}
  #allocation0 [shape = 'u32[]', space=smem, size = 0x4, offset = 0x4, fixed_abs, tag = 'smem constant byte address 0x4 - core index']
  #allocation1 [shape = 'u32[144,128]{1,0:T(1,128)}', space=vmem, size = 0x12000, scoped, tag = 'internal scratch']
  %s0 = inlined_call_operand.hbm [shape: f32[8,12], index: 0, kind: input, shape index: {}]
  %s1 = inlined_call_operand.hbm [shape: s32[4,81], index: 1, kind: input, shape index: {}]
  %s2 = inlined_call_operand.hbm [shape: f32[8,81], index: 2, kind: output, shape index: {}]
  %s3 = sld [smem:[#allocation0]]
  $region26: #{tpu_custom_call.1} parent=0
    _
  %s5 = ssub.s32 1, %s3
  %s6 = scalar_select 0, %s5, %s3
  $region1: #{tpu_custom_call.1} parent=0
    #allocation2 [shape = 'u8[4096]{0}', space=vmem, size = 0x1000, scoped, tag = 'input window, operand 0, single buffered']
    #allocation3 [shape = 's32[1]{0}', space=sflag, size = 0x4, scoped, tag = 'scoped memory for tpu_custom_call.1']
    #allocation4 [shape = 's32[1]{0}', space=sflag, size = 0x4, scoped, tag = 'scoped memory for tpu_custom_call.1']
    #allocation5 [shape = 'u8[2048]{0}', space=vmem, size = 0x800, scoped, tag = 'input window, operand 1, single buffered']
    #allocation6 [shape = 's32[1]{0}', space=sflag, size = 0x4, scoped, tag = 'scoped memory for tpu_custom_call.1']
    #allocation7 [shape = 'u8[4096]{0}', space=vmem, size = 0x1000, scoped, tag = 'output window, operand 0, single buffered']
    %7 = vsyncpa [#allocation3], 0
    %8 = vsyncpa [#allocation6], 0
    %9 = vsyncpa [#allocation4], 0
    // Predicated region
    $region2: #{tpu_custom_call.1} parent=1 // pred_check
      _
    $region3: #{tpu_custom_call.1} parent=1 // pred_check_branch
      %11 = sbr.rel (0) target = $region5
    $region4: #{tpu_custom_call.1} parent=1 // pred_region
      %s13 = ssub.s32 128, 128
      %14 = vsyncadd [#allocation3], %s13
      %s16 = sshll.u32 [#allocation2], 4
      %s17 = int_to_ptr.vmem [resolvable:$true] %s16
      %19 = dma.hbm_to_vmem [thread:$0]  %s0, 128, %s17, [#allocation3]
    $region5: #{tpu_custom_call.1} parent=1 // pred_fallthru
      _
    // Predicated region
    $region6: #{tpu_custom_call.1} parent=1 // pred_check
      _
    $region7: #{tpu_custom_call.1} parent=1 // pred_check_branch
      %21 = sbr.rel (0) target = $region9
    $region8: #{tpu_custom_call.1} parent=1 // pred_region
      %s23 = ssub.s32 64, 64
      %24 = vsyncadd [#allocation6], %s23
      %s26 = sshll.u32 [#allocation5], 4
      %s27 = int_to_ptr.vmem [resolvable:$true] %s26
      %29 = dma.hbm_to_vmem [thread:$0]  %s1, 64, %s27, [#allocation6]
    $region9: #{tpu_custom_call.1} parent=1 // pred_fallthru
      _
    // Predicated region
    $region10: #{tpu_custom_call.1} parent=1 // pred_check
      _
    $region11: #{tpu_custom_call.1} parent=1 // pred_check_branch
      %31 = sbr.rel (0) target = $region13
    $region12: #{tpu_custom_call.1} parent=1 // pred_region
      %32 = dma.done [#allocation3], 128
    $region13: #{tpu_custom_call.1} parent=1 // pred_fallthru
      _
    // Predicated region
    $region14: #{tpu_custom_call.1} parent=1 // pred_check
      _
    $region15: #{tpu_custom_call.1} parent=1 // pred_check_branch
      %34 = sbr.rel (0) target = $region17
    $region16: #{tpu_custom_call.1} parent=1 // pred_region
      %35 = dma.done [#allocation6], 64
    $region17: #{tpu_custom_call.1} parent=1 // pred_fallthru
      _
    %v36 = vld [vmem:[#allocation2] sm:$0xff]
    %v37 = vld [vmem:[#allocation5] sm:$0x1]
    %vm38 = vcmp.eq.s32.totalorder %v37, 0
    %v39 = vsel %vm38, 1, 0
    %v40 = vlaneseq
    %v41 = vshrl.u32 %v40, 7
    %v42 = vsub.s32 0, %v41
    %v43 = vrot.slane %v39, %v42
    %vm44 = vcmp.eq.s32.totalorder %v43, 1
    %46 = vset.pattern.permute.xlu0 0
    %47 = vperm.xlu0 %46, %v36
    %v48 = vpop.permute.xlu0 %47
    %v50 = vsel %vm44, %v48, 0.0
    %vm51 = vcmp.eq.s32.totalorder %v37, 1
    %v52 = vsel %vm51, 1, 0
    %v53 = vlaneseq
    %v54 = vshrl.u32 %v53, 7
    %v55 = vsub.s32 0, %v54
    %v56 = vrot.slane %v52, %v55
    %vm57 = vcmp.eq.s32.totalorder %v56, 1
    %58 = vset.pattern.permute.xlu0 1
    %59 = vperm.xlu0 %58, %v36
    %v60 = vpop.permute.xlu0 %59
    %v62 = vsel %vm57, %v60, %v50
    %vm63 = vcmp.eq.s32.totalorder %v37, 2
    %v64 = vsel %vm63, 1, 0
    %v65 = vlaneseq
    %v66 = vshrl.u32 %v65, 7
    %v67 = vsub.s32 0, %v66
    %v68 = vrot.slane %v64, %v67
    %vm69 = vcmp.eq.s32.totalorder %v68, 1
    %70 = vset.pattern.permute.xlu0 2
    %71 = vperm.xlu0 %70, %v36
    %v72 = vpop.permute.xlu0 %71
    %v74 = vsel %vm69, %v72, %v62
    %v75 = vld [vmem:[#allocation5 + $0x1] sm:$0x1]
    %vm76 = vcmp.eq.s32.totalorder %v75, 0
    %v77 = vsel %vm76, 1, 0
    %v78 = vlaneseq
    %v79 = vshrl.u32 %v78, 7
    %v80 = vsub.s32 0, %v79
    %v81 = vrot.slane %v77, %v80
    %vm82 = vcmp.eq.s32.totalorder %v81, 1
    %83 = vset.pattern.permute.xlu0 3
    %84 = vperm.xlu0 %83, %v36
    %v85 = vpop.permute.xlu0 %84
    %v87 = vsel %vm82, %v85, 0.0
    %vm88 = vcmp.eq.s32.totalorder %v75, 1
    %v89 = vsel %vm88, 1, 0
    %v90 = vlaneseq
    %v91 = vshrl.u32 %v90, 7
    %v92 = vsub.s32 0, %v91
    %v93 = vrot.slane %v89, %v92
    %vm94 = vcmp.eq.s32.totalorder %v93, 1
    %95 = vset.pattern.permute.xlu0 4
    %96 = vperm.xlu0 %95, %v36
    %v97 = vpop.permute.xlu0 %96
    %v99 = vsel %vm94, %v97, %v87
    %vm100 = vcmp.eq.s32.totalorder %v75, 2
    %v101 = vsel %vm100, 1, 0
    %v102 = vlaneseq
    %v103 = vshrl.u32 %v102, 7
    %v104 = vsub.s32 0, %v103
    %v105 = vrot.slane %v101, %v104
    %vm106 = vcmp.eq.s32.totalorder %v105, 1
    %107 = vset.pattern.permute.xlu0 5
    %108 = vperm.xlu0 %107, %v36
    %v109 = vpop.permute.xlu0 %108
    %v111 = vsel %vm106, %v109, %v99
    %v112 = vmul.f32 %v74, %v111
    %v113 = vld [vmem:[#allocation5 + $0x2] sm:$0x1]
    %vm114 = vcmp.eq.s32.totalorder %v113, 0
    %v115 = vsel %vm114, 1, 0
    %v116 = vlaneseq
    %v117 = vshrl.u32 %v116, 7
    %v118 = vsub.s32 0, %v117
    %v119 = vrot.slane %v115, %v118
    %vm120 = vcmp.eq.s32.totalorder %v119, 1
    %121 = vset.pattern.permute.xlu0 6
    %122 = vperm.xlu0 %121, %v36
    %v123 = vpop.permute.xlu0 %122
    %v125 = vsel %vm120, %v123, 0.0
    %vm126 = vcmp.eq.s32.totalorder %v113, 1
    %v127 = vsel %vm126, 1, 0
    %v128 = vlaneseq
    %v129 = vshrl.u32 %v128, 7
    %v130 = vsub.s32 0, %v129
    %v131 = vrot.slane %v127, %v130
    %vm132 = vcmp.eq.s32.totalorder %v131, 1
    %133 = vset.pattern.permute.xlu0 7
    %134 = vperm.xlu0 %133, %v36
    %v135 = vpop.permute.xlu0 %134
    %v137 = vsel %vm132, %v135, %v125
    %vm138 = vcmp.eq.s32.totalorder %v113, 2
    %v139 = vsel %vm138, 1, 0
    %v140 = vlaneseq
    %v141 = vshrl.u32 %v140, 7
    %v142 = vsub.s32 0, %v141
    %v143 = vrot.slane %v139, %v142
    %vm144 = vcmp.eq.s32.totalorder %v143, 1
    %145 = vset.pattern.permute.xlu0 8
    %146 = vperm.xlu0 %145, %v36
    %v147 = vpop.permute.xlu0 %146
    %v149 = vsel %vm144, %v147, %v137
    %v150 = vmul.f32 %v112, %v149
    %v151 = vld [vmem:[#allocation5 + $0x3] sm:$0x1]
    %vm152 = vcmp.eq.s32.totalorder %v151, 0
    %v153 = vsel %vm152, 1, 0
    %v154 = vlaneseq
    %v155 = vshrl.u32 %v154, 7
    %v156 = vsub.s32 0, %v155
    %v157 = vrot.slane %v153, %v156
    %vm158 = vcmp.eq.s32.totalorder %v157, 1
    %159 = vset.pattern.permute.xlu0 9
    %160 = vperm.xlu0 %159, %v36
    %v161 = vpop.permute.xlu0 %160
    %v163 = vsel %vm158, %v161, 0.0
    %vm164 = vcmp.eq.s32.totalorder %v151, 1
    %v165 = vsel %vm164, 1, 0
    %v166 = vlaneseq
    %v167 = vshrl.u32 %v166, 7
    %v168 = vsub.s32 0, %v167
    %v169 = vrot.slane %v165, %v168
    %vm170 = vcmp.eq.s32.totalorder %v169, 1
    %171 = vset.pattern.permute.xlu0 10
    %172 = vperm.xlu0 %171, %v36
    %v173 = vpop.permute.xlu0 %172
    %v175 = vsel %vm170, %v173, %v163
    %vm176 = vcmp.eq.s32.totalorder %v151, 2
    %v177 = vsel %vm176, 1, 0
    %v178 = vlaneseq
    %v179 = vshrl.u32 %v178, 7
    %v180 = vsub.s32 0, %v179
    %v181 = vrot.slane %v177, %v180
    %vm182 = vcmp.eq.s32.totalorder %v181, 1
    %183 = vset.pattern.permute.xlu0 11
    %184 = vperm.xlu0 %183, %v36
    %v185 = vpop.permute.xlu0 %184
    %v187 = vsel %vm182, %v185, %v175
    %v188 = vmul.f32 %v150, %v187
    %189 = vst [vmem:[#allocation7] sm:$0xff] %v188
    // Predicated region
    $region18: #{tpu_custom_call.1} parent=1 // pred_check
      _
    $region19: #{tpu_custom_call.1} parent=1 // pred_check_branch
      %191 = sbr.rel (0) target = $region21
    $region20: #{tpu_custom_call.1} parent=1 // pred_region
      %s193 = ssub.s32 128, 128
      %194 = vsyncadd [#allocation4], %s193
      %s196 = sshll.u32 [#allocation7], 4
      %s197 = int_to_ptr.vmem [resolvable:$true] %s196
      %199 = dma.vmem_to_hbm [thread:$0]  %s197, 128, %s2, [#allocation4]
    $region21: #{tpu_custom_call.1} parent=1 // pred_fallthru
      _
    // Predicated region
    $region22: #{tpu_custom_call.1} parent=1 // pred_check
      _
    $region23: #{tpu_custom_call.1} parent=1 // pred_check_branch
      %201 = sbr.rel (0) target = $region25
    $region24: #{tpu_custom_call.1} parent=1 // pred_region
      %202 = dma.done [#allocation4], 128
    $region25: #{tpu_custom_call.1} parent=1 // pred_fallthru
      _
    %203 = vsyncpa [#allocation3], 1
    %204 = vsyncpa [#allocation6], 1
    %205 = vsyncpa [#allocation4], 1

</llo_original>
